<compile_context>
chip_gen: v5e
topology: v5e:2x2
jax: 0.10.0
libtpu: 0.0.40
codegen_flags: <defaults>
</compile_context>

<pallas_src>
import math
from functools import partial

import jax
import jax.numpy as jnp
from jax import lax
from jax.experimental import pallas as pl
from jax.experimental.pallas import tpu as pltpu


# ---------------------------------------------------------------------------
# Kernel 1: fused linear projection on lane-dense 2-D (rows, d_in) slabs.
# ---------------------------------------------------------------------------
def _linear_kernel(x_ref, w_ref, b_ref, o_ref):
    acc = jnp.dot(x_ref[...], w_ref[...], preferred_element_type=jnp.float32)
    o_ref[...] = (acc + b_ref[...]).astype(o_ref.dtype)


def _linear(x2d, w, b, *, row_tile=256):
    """(rows, d_in) @ (d_in, d_out) + b  ->  bf16 (rows, d_out)."""
    rows, d_in = x2d.shape
    d_out = w.shape[1]
    tr = min(row_tile, rows)
    return pl.pallas_call(
        _linear_kernel,
        out_shape=jax.ShapeDtypeStruct((rows, d_out), jnp.bfloat16),
        grid=(pl.cdiv(rows, tr),),
        in_specs=[
            pl.BlockSpec((tr, d_in), lambda i: (i, 0)),
            pl.BlockSpec((d_in, d_out), lambda i: (0, 0)),   # fetched once
            pl.BlockSpec((1, d_out), lambda i: (0, 0)),
        ],
        out_specs=pl.BlockSpec((tr, d_out), lambda i: (i, 0)),
        compiler_params=pltpu.CompilerParams(
            dimension_semantics=("parallel",)),
    )(x2d, w, b)


# ---------------------------------------------------------------------------
# Kernel 2: per-(batch, query-tile) attention + fused output projection.
# Refs: qp (tq, h*d_k), kp (nk, h*d_k), vp (nk, h*d_v) bf16;
#       wo (h*d_v, d_model) bf16; bo (1, d_model) f32; out (tq, d_model).
# ---------------------------------------------------------------------------
def _attn_kernel(qp_ref, kp_ref, vp_ref, wo_ref, bo_ref, o_ref,
                 *, h, d_k, d_v):
    f32, bf16 = jnp.float32, jnp.bfloat16
    qp = qp_ref[...]
    kp = kp_ref[...]
    vp = vp_ref[...]
    dn = (((1,), (1,)), ((), ()))   # contract last dims: (q,d)x(k,d) -> (q,k)

    head_outs = []
    for hh in range(h):            # h is a small compile-time constant
        q_h = qp[:, hh * d_k:(hh + 1) * d_k]          # (tq, d_k)
        k_h = kp[:, hh * d_k:(hh + 1) * d_k]          # (nk, d_k)
        v_h = vp[:, hh * d_v:(hh + 1) * d_v]          # (nk, d_v)

        # scores already scaled (1/sqrt(d_k) folded into Wq / bq)
        s = lax.dot_general(q_h, k_h, dn, preferred_element_type=f32)

        # numerically stable softmax; normalize AFTER the PV matmul (f32)
        m = jnp.max(s, axis=-1, keepdims=True)
        p = jnp.exp(s - m)                             # (tq, nk) f32
        l = jnp.sum(p, axis=-1, keepdims=True)         # (tq, 1)  f32
        o_h = jnp.dot(p.astype(bf16), v_h, preferred_element_type=f32)
        o_h = o_h * pl.reciprocal(l, approx=True)      # (tq, d_v) f32
        head_outs.append(o_h.astype(bf16))

    # single concatenated output projection: (tq, h*d_v) @ (h*d_v, d_model)
    o_cat = jnp.concatenate(head_outs, axis=-1)
    out = jnp.dot(o_cat, wo_ref[...], preferred_element_type=f32) + bo_ref[...]
    o_ref[...] = out.astype(o_ref.dtype)


# ---------------------------------------------------------------------------
# One-time parameter transform: transpose Linear weights to (in, out), fold
# 1/sqrt(d_k) into Wq/bq, cast matmul weights to bf16, biases to 2-D f32 rows.
# ---------------------------------------------------------------------------
def prepare_params(params, d_model, d_k, d_v, h):
    wq, bq, wk, bk, wv, bv, wo, bo = params
    scale = 1.0 / math.sqrt(d_k)
    return (
        (wq.T * scale).astype(jnp.bfloat16),                   # (d_model, h*d_k)
        (bq * scale).reshape(1, h * d_k).astype(jnp.float32),
        wk.T.astype(jnp.bfloat16),                             # (d_model, h*d_k)
        bk.reshape(1, h * d_k).astype(jnp.float32),
        wv.T.astype(jnp.bfloat16),                             # (d_model, h*d_v)
        bv.reshape(1, h * d_v).astype(jnp.float32),
        wo.T.astype(jnp.bfloat16),                             # (h*d_v, d_model)
        bo.reshape(1, d_model).astype(jnp.float32),
    )


# ---------------------------------------------------------------------------
# Wrapper.  queries/keys/values: (seq, batch, d_model); output same layout.
# ---------------------------------------------------------------------------
def lscaled_dot_product_attention(queries, keys, values, prepared_params,
                                  d_model, d_k, d_v, h, q_tile=256):
    # q_tile=256 targets v6e/v7x's 256-wide MXU; use 128 on v5e.
    wq_t, bq2, wk_t, bk2, wv_t, bv2, wo_t, bo2 = prepared_params
    nq, b_s, _ = queries.shape
    nk = keys.shape[0]

    # Batch-major, bf16, lane-dense rows (layout plumbing, done once).
    q_bm = jnp.transpose(queries, (1, 0, 2)).astype(jnp.bfloat16)
    k_bm = jnp.transpose(keys, (1, 0, 2)).astype(jnp.bfloat16)
    v_bm = jnp.transpose(values, (1, 0, 2)).astype(jnp.bfloat16)

    # Projections: one fused matmul over all (batch*seq) rows each; K/V are
    # projected exactly once (not per query tile).
    qp = _linear(q_bm.reshape(b_s * nq, d_model), wq_t, bq2)
    kp = _linear(k_bm.reshape(b_s * nk, d_model), wk_t, bk2)
    vp = _linear(v_bm.reshape(b_s * nk, d_model), wv_t, bv2)
    qp = qp.reshape(b_s, nq, h * d_k)
    kp = kp.reshape(b_s, nk, h * d_k)
    vp = vp.reshape(b_s, nk, h * d_v)

    tq = min(q_tile, nq)
    grid = (b_s, pl.cdiv(nq, tq))

    out_bm = pl.pallas_call(
        partial(_attn_kernel, h=h, d_k=d_k, d_v=d_v),
        out_shape=jax.ShapeDtypeStruct((b_s, nq, d_model), queries.dtype),
        grid=grid,
        in_specs=[
            pl.BlockSpec((None, tq, h * d_k), lambda b, i: (b, i, 0)),
            pl.BlockSpec((None, nk, h * d_k), lambda b, i: (b, 0, 0)),
            pl.BlockSpec((None, nk, h * d_v), lambda b, i: (b, 0, 0)),
            pl.BlockSpec((h * d_v, d_model), lambda b, i: (0, 0)),
            pl.BlockSpec((1, d_model), lambda b, i: (0, 0)),
        ],
        out_specs=pl.BlockSpec((None, tq, d_model), lambda b, i: (b, i, 0)),
        compiler_params=pltpu.CompilerParams(
            dimension_semantics=("parallel", "parallel")),
    )(qp, kp, vp, wo_t, bo2)

    return jnp.transpose(out_bm, (1, 0, 2))   # back to (seq, batch, d_model)


# ---------------------------------------------------------------------------
# Deterministic parameter init (mirrors the module's init_weights):
#   xavier_uniform_ on weights, zeros on biases.
# ---------------------------------------------------------------------------
def xavier_uniform(key, out_features, in_features):
    bound = math.sqrt(6.0 / (in_features + out_features))
    return jax.random.uniform(key, (out_features, in_features),
                              jnp.float32, -bound, bound)


def make_params(key, d_model, d_k, d_v, h):
    kq, kk, kv, ko = jax.random.split(key, 4)
    wq = xavier_uniform(kq, h * d_k, d_model)
    wk = xavier_uniform(kk, h * d_k, d_model)
    wv = xavier_uniform(kv, h * d_v, d_model)
    wo = xavier_uniform(ko, d_model, h * d_v)
    bq = jnp.zeros((h * d_k,), jnp.float32)
    bk = jnp.zeros((h * d_k,), jnp.float32)
    bv = jnp.zeros((h * d_v,), jnp.float32)
    bo = jnp.zeros((d_model,), jnp.float32)
    return (wq, bq, wk, bk, wv, bv, wo, bo)


# Pure-JAX f32 reference (direct transcription of the PyTorch forward, groups=1).
def reference(queries, keys, values, params, d_model, d_k, d_v, h):
    wq, bq, wk, bk, wv, bv, wo, bo = params
    q = jnp.transpose(queries, (1, 0, 2))
    k = jnp.transpose(keys, (1, 0, 2))
    v = jnp.transpose(values, (1, 0, 2))
    b_s, nq, _ = q.shape
    nk = k.shape[1]
    qp = (q @ wq.T + bq).reshape(b_s, nq, h, d_k).transpose(0, 2, 1, 3)
    kp = (k @ wk.T + bk).reshape(b_s, nk, h, d_k).transpose(0, 2, 3, 1)
    vp = (v @ wv.T + bv).reshape(b_s, nk, h, d_v).transpose(0, 2, 1, 3)
    att = jax.nn.softmax(qp @ kp / math.sqrt(d_k), axis=-1)
    out = (att @ vp).transpose(0, 2, 1, 3).reshape(b_s, nq, h * d_v)
    out = out @ wo.T + bo
    return jnp.transpose(out, (1, 0, 2))


if __name__ == "__main__":
    d_model, d_k, d_v, h = 32, 16, 16, 4   # groups = 1
    seq, batch = 8, 2

    key = jax.random.PRNGKey(0)
    kp_, kq_, kk_, kv_ = jax.random.split(key, 4)
    params = make_params(kp_, d_model, d_k, d_v, h)
    prepared = prepare_params(params, d_model, d_k, d_v, h)

    queries = jax.random.normal(kq_, (seq, batch, d_model), jnp.float32)
    keys = jax.random.normal(kk_, (seq, batch, d_model), jnp.float32)
    values = jax.random.normal(kv_, (seq, batch, d_model), jnp.float32)

    out = lscaled_dot_product_attention(queries, keys, values, prepared,
                                        d_model, d_k, d_v, h)
    out = jax.block_until_ready(out)

    ref = reference(queries, keys, values, params, d_model, d_k, d_v, h)
    assert out.shape == (seq, batch, d_model)
    # bf16 matmul operands in the kernels -> loosened tolerance vs f32 reference.
    assert jnp.allclose(out, ref, atol=5e-2, rtol=5e-2), "mismatch vs reference"
    print("KERNEL_OK")
</pallas_src>

<mosaic_0001>
module attributes {stable_mosaic.version = 11 : i64} {
  func.func @_linear_kernel(%arg0: i32, %arg1: memref<16x32xbf16, #tpu.memory_space<vmem>>, %arg2: memref<32x64xbf16, #tpu.memory_space<vmem>>, %arg3: memref<1x64xf32, #tpu.memory_space<vmem>>, %arg4: memref<16x64xbf16, #tpu.memory_space<vmem>>) attributes {dimension_semantics = [#tpu.dimension_semantics<parallel>], iteration_bounds = array<i64: 1>, scalar_prefetch = 0 : i64, scratch_operands = 0 : i64, tpu.core_type = #tpu.core_type<tc>, window_params = [{transform_indices = @transform_0, window_bounds = array<i64: 16, 32>}, {pipeline_mode = #tpu.pipeline_mode<synchronous>, transform_indices = @transform_1, window_bounds = array<i64: 32, 64>}, {pipeline_mode = #tpu.pipeline_mode<synchronous>, transform_indices = @transform_2, window_bounds = array<i64: 1, 64>}, {transform_indices = @transform_3, window_bounds = array<i64: 16, 64>}]} {
    %c0 = arith.constant 0 : index
    %c0_0 = arith.constant 0 : index
    %0 = vector.load %arg1[%c0, %c0_0] : memref<16x32xbf16, #tpu.memory_space<vmem>>, vector<16x32xbf16>
    %c0_1 = arith.constant 0 : index
    %c0_2 = arith.constant 0 : index
    %1 = vector.load %arg2[%c0_1, %c0_2] : memref<32x64xbf16, #tpu.memory_space<vmem>>, vector<32x64xbf16>
    %cst = arith.constant dense<0.000000e+00> : vector<16x64xf32>
    %2 = tpu.matmul %0, %1, %cst {dimension_numbers = #tpu.dot_dimension_numbers<[1], [0], [0], [1], [0, 0, 1, 1], [], []>} : vector<16x32xbf16>, vector<32x64xbf16>, vector<16x64xf32> -> vector<16x64xf32>
    %c0_3 = arith.constant 0 : index
    %c0_4 = arith.constant 0 : index
    %3 = vector.load %arg3[%c0_3, %c0_4] : memref<1x64xf32, #tpu.memory_space<vmem>>, vector<1x64xf32>
    %4 = vector.broadcast %3 : vector<1x64xf32> to vector<16x64xf32>
    %5 = arith.addf %2, %4 : vector<16x64xf32>
    %6 = arith.truncf %5 : vector<16x64xf32> to vector<16x64xbf16>
    %c0_5 = arith.constant 0 : index
    %c0_6 = arith.constant 0 : index
    %7 = vector.load %arg4[%c0_5, %c0_6] : memref<16x64xbf16, #tpu.memory_space<vmem>>, vector<16x64xbf16>
    tpu.vector_store %arg4[%c0_5, %c0_6], %6 {strides = array<i32>} : memref<16x64xbf16, #tpu.memory_space<vmem>>, vector<16x64xbf16>,
    return
  }
  func.func @transform_0(%arg0: i32) -> (i32, i32) {
    %c0_i32 = arith.constant 0 : i32
    %c0_i32_0 = arith.constant 0 : i32
    return %arg0, %c0_i32 : i32, i32
  }
  func.func @transform_1(%arg0: i32) -> (i32, i32) {
    %c0_i32 = arith.constant 0 : i32
    %c0_i32_0 = arith.constant 0 : i32
    %c0_i32_1 = arith.constant 0 : i32
    return %c0_i32, %c0_i32_0 : i32, i32
  }
  func.func @transform_2(%arg0: i32) -> (i32, i32) {
    %c0_i32 = arith.constant 0 : i32
    %c0_i32_0 = arith.constant 0 : i32
    %c0_i32_1 = arith.constant 0 : i32
    return %c0_i32, %c0_i32_0 : i32, i32
  }
  func.func @transform_3(%arg0: i32) -> (i32, i32) {
    %c0_i32 = arith.constant 0 : i32
    %c0_i32_0 = arith.constant 0 : i32
    return %arg0, %c0_i32 : i32, i32
  }
}

</mosaic_0001>

<llo_original>
// kernel: tpu_custom_call.1
$region0: #{tpu_custom_call.1}
  #allocation0 [shape = 'u32[]', space=smem, size = 0x4, offset = 0x4, fixed_abs, tag = 'smem constant byte address 0x4 - core index']
  #allocation1 [shape = 'u32[72,128]{1,0:T(1,128)}', space=vmem, size = 0x9000, scoped, tag = 'internal scratch']
  %s0 = inlined_call_operand.hbm [shape: bf16[16,32], index: 0, kind: input, shape index: {}]
  %s1 = inlined_call_operand.hbm [shape: bf16[32,64], index: 1, kind: input, shape index: {}]
  %s2 = inlined_call_operand.vmem [shape: f32[1,64], index: 2, kind: input, shape index: {}]
  %s3 = inlined_call_operand.hbm [shape: bf16[16,64], index: 3, kind: output, shape index: {}]
  %s4 = sld [smem:[#allocation0]]
  $region30: #{tpu_custom_call.1} parent=0
    _
  %s6 = ssub.s32 1, %s4
  %s7 = scalar_select 0, %s6, %s4
  $region1: #{tpu_custom_call.1} parent=0
    #allocation2 [shape = 'u8[4096]{0}', space=vmem, size = 0x1000, scoped, tag = 'input window, operand 0, single buffered']
    #allocation3 [shape = 's32[1]{0}', space=sflag, size = 0x4, scoped, tag = 'scoped memory for tpu_custom_call.1']
    #allocation4 [shape = 's32[1]{0}', space=sflag, size = 0x4, scoped, tag = 'scoped memory for tpu_custom_call.1']
    #allocation5 [shape = 'u8[8192]{0}', space=vmem, size = 0x2000, scoped, tag = 'input window, operand 1, single buffered']
    #allocation6 [shape = 's32[1]{0}', space=sflag, size = 0x4, scoped, tag = 'scoped memory for tpu_custom_call.1']
    #allocation7 [shape = 'u8[4096]{0}', space=vmem, size = 0x1000, scoped, tag = 'output window, operand 0, single buffered']
    %8 = vsyncpa [#allocation3], 0
    %9 = vsyncpa [#allocation6], 0
    %10 = vsyncpa [#allocation4], 0
    // Predicated region
    $region2: #{tpu_custom_call.1} parent=1 // pred_check
      _
    $region3: #{tpu_custom_call.1} parent=1 // pred_check_branch
      %12 = sbr.rel (0) target = $region5
    $region4: #{tpu_custom_call.1} parent=1 // pred_region
      %14 = vsyncadd [#allocation3], 0
      %s15 = sshll.u32 %s0, 4
      %s16 = int_to_ptr.hbm [resolvable:$true] %s15
      %s17 = sshll.u32 [#allocation2], 4
      %s18 = int_to_ptr.vmem [resolvable:$true] %s17
      %23 = dma.hbm_to_vmem [thread:$0]  %s16, 128, %s18, [#allocation3], 64, 64, 4
    $region5: #{tpu_custom_call.1} parent=1 // pred_fallthru
      _
    // Predicated region
    $region6: #{tpu_custom_call.1} parent=1 // pred_check
      _
    $region7: #{tpu_custom_call.1} parent=1 // pred_check_branch
      %25 = sbr.rel (0) target = $region9
    $region8: #{tpu_custom_call.1} parent=1 // pred_region
      %27 = vsyncadd [#allocation6], 0
      %s28 = sshll.u32 %s1, 4
      %s29 = int_to_ptr.hbm [resolvable:$true] %s28
      %s30 = sshll.u32 [#allocation5], 4
      %s31 = int_to_ptr.vmem [resolvable:$true] %s30
      %36 = dma.hbm_to_vmem [thread:$0]  %s29, 256, %s31, [#allocation6], 64, 64, 4
    $region9: #{tpu_custom_call.1} parent=1 // pred_fallthru
      _
    // Predicated region
    $region10: #{tpu_custom_call.1} parent=1 // pred_check
      _
    $region11: #{tpu_custom_call.1} parent=1 // pred_check_branch
      %38 = sbr.rel (0) target = $region13
    $region12: #{tpu_custom_call.1} parent=1 // pred_region
      _
    $region13: #{tpu_custom_call.1} parent=1 // pred_fallthru
      _
    // Predicated region
    $region14: #{tpu_custom_call.1} parent=1 // pred_check
      _
    $region15: #{tpu_custom_call.1} parent=1 // pred_check_branch
      %40 = sbr.rel (0) target = $region17
    $region16: #{tpu_custom_call.1} parent=1 // pred_region
      %42 = dma.done [#allocation3], 128
    $region17: #{tpu_custom_call.1} parent=1 // pred_fallthru
      _
    // Predicated region
    $region18: #{tpu_custom_call.1} parent=1 // pred_check
      _
    $region19: #{tpu_custom_call.1} parent=1 // pred_check_branch
      %44 = sbr.rel (0) target = $region21
    $region20: #{tpu_custom_call.1} parent=1 // pred_region
      %46 = dma.done [#allocation6], 256
    $region21: #{tpu_custom_call.1} parent=1 // pred_fallthru
      _
    %v48 = vld [vmem:[#allocation2] sm:$0xf]
    %v49 = vld [vmem:[#allocation2 + $0x4] sm:$0xf]
    %v50 = vld [vmem:[#allocation5] sm:$0xf]
    %v51 = vld [vmem:[#allocation5 + $0x4] sm:$0xf]
    %v52 = vld [vmem:[#allocation5 + $0x8] sm:$0xf]
    %v53 = vld [vmem:[#allocation5 + $0xc] sm:$0xf]
    %v54 = vld [vmem:[%s2] sm:$0x1]
    %v56 = vperm.slane %v54, 0
    %v60 = vunpack.c.l.b16 %v48
    %v61 = vunpack.c.l.b16 %v49
    %v62 = vpack.c.b16 %v61, %v60
    %v67 = vunpack.c.l.b16 %v50
    %v68 = vunpack.c.l.b16 %v51
    %v69 = vunpack.c.l.b16 %v52
    %v70 = vunpack.c.l.b16 %v53
    %v71 = vpack.c.b16 %v68, %v67
    %v72 = vpack.c.b16 %v70, %v69
    %vm75 = vcmask 261120
    %v77 = vsel %vm75, %v62, 0
    %79 = vmatpush.bf16.msra.mxu0 0
    %80 = vmatpush.bf16.msra.mxu0 0
    %81 = vmatpush.bf16.msra.mxu0 0
    %82 = vmatpush.bf16.msra.mxu0 0
    %83 = vmatpush.bf16.msra.mxu0 0
    %84 = vmatpush.bf16.msra.mxu0 0
    %85 = vmatpush.bf16.msra.mxu0 %v72
    %86 = vmatpush.bf16.msra.mxu0 %v71
    %87 = vmatmul.bf16.gmra.mxu0 %v77
    %v88 = vpop.f32.mrf.mxu0
    %v89 = vadd.f32 %v56, %v88
    %v90 = vpop.f32.mrf.mxu0
    %v91 = vadd.f32 %v56, %v90
    %92 = vdwg.mxu0
    %v93 = vpack.c.bf16 %v89, %v89
    %v94 = vpack.c.bf16 %v91, %v91
    %vm95 = vcmask 519168
    %96 = vst.msk [vmem:[#allocation7] sm:$0xf] %vm95, %v93
    %97 = vst.msk [vmem:[#allocation7 + $0x4] sm:$0xf] %vm95, %v94
    // Predicated region
    $region22: #{tpu_custom_call.1} parent=1 // pred_check
      _
    $region23: #{tpu_custom_call.1} parent=1 // pred_check_branch
      %99 = sbr.rel (0) target = $region25
    $region24: #{tpu_custom_call.1} parent=1 // pred_region
      %101 = vsyncadd [#allocation4], 0
      %s102 = sshll.u32 [#allocation7], 4
      %s103 = int_to_ptr.vmem [resolvable:$true] %s102
      %s104 = sshll.u32 %s3, 4
      %s105 = int_to_ptr.hbm [resolvable:$true] %s104
      %110 = dma.vmem_to_hbm [thread:$0]  %s103, 128, %s105, [#allocation4], 64, 64, 4
    $region25: #{tpu_custom_call.1} parent=1 // pred_fallthru
      _
    // Predicated region
    $region26: #{tpu_custom_call.1} parent=1 // pred_check
      _
    $region27: #{tpu_custom_call.1} parent=1 // pred_check_branch
      %112 = sbr.rel (0) target = $region29
    $region28: #{tpu_custom_call.1} parent=1 // pred_region
      %114 = dma.done [#allocation4], 128
    $region29: #{tpu_custom_call.1} parent=1 // pred_fallthru
      _
    %115 = vsyncpa [#allocation3], 1
    %116 = vsyncpa [#allocation6], 1
    %117 = vsyncpa [#allocation4], 1

</llo_original>
